<compile_context>
chip_gen: v7x
topology: tpu7x:2x2x1
jax: 0.10.0
libtpu: 0.0.40
codegen_flags: <defaults>
</compile_context>

<pallas_src>
import functools

import jax
import jax.numpy as jnp
from jax.experimental import pallas as pl
from jax.experimental.pallas import tpu as pltpu

# ----------------------------- configuration -----------------------------
BATCH = 8          # matches the 8-sublane vreg tile
D_IN = 32          # logical model sizes (small, per the module spec)
D_OUT = 16
LR = 0.1           # SGD learning rate (optimizer hyper-parameter, baked in)
NUM_STEPS = 4      # training steps fused into one kernel launch
LANE = 128         # TPU lane width


def _round_up(x, m):
    return ((x + m - 1) // m) * m


# ------------------------------- kernel ----------------------------------
def _train_kernel(num_steps, n_elems, lr,
                  x_ref, t_ref, w_ref, b_ref,        # inputs  (VMEM)
                  loss_ref, w_out_ref, b_out_ref):   # outputs (SMEM, VMEM, VMEM)
    inv_n = 1.0 / n_elems

    w = w_ref[...]          # (D_in, D_out_pad)  fp32 master weights
    b = b_ref[...]          # (1, D_out_pad)

    # All training steps are fused into a single kernel invocation (no grid):
    # per-step compute is a few hundred cycles, so a fully-unrolled static
    # loop with W/b carried in vregs avoids all per-grid-step overhead.
    # (For large NUM_STEPS switch to lax.fori_loop / a chunked grid axis.)
    for s in range(num_steps):
        x = x_ref[s]        # (B, D_in)       static index, already in VMEM
        t = t_ref[s]        # (B, D_out_pad)  padded cols are exactly zero

        # forward: output = model(input)
        out = jnp.dot(x, w, preferred_element_type=jnp.float32) + b   # MXU

        # criterion: MSE loss, mean over the *logical* (unpadded) elements.
        diff = out - t                              # padded cols stay zero
        loss_ref[s] = jnp.sum(diff * diff) * inv_n  # scalar -> SMEM

        # backward (analytic): dL/dout = 2 * diff / n
        g = diff * (2.0 * inv_n)
        # dW = x^T @ g, contracting the batch axis directly (no XLU transpose).
        dw = jax.lax.dot_general(
            x, g,
            dimension_numbers=(((0,), (0,)), ((), ())),
            preferred_element_type=jnp.float32)      # (D_in, D_out_pad)
        db = jnp.sum(g, axis=0, keepdims=True)       # (1, D_out_pad)

        # optimizer step (SGD)
        w = w - lr * dw
        b = b - lr * db

    # Lane-dense final parameter stores (aliased in place with the inputs).
    w_out_ref[...] = w
    b_out_ref[...] = b


# ------------------------------ wrapper -----------------------------------
@functools.partial(jax.jit, static_argnames=("lr",))
def fused_train_steps(xs, ts, w, b, *, lr=LR):
    """One jitted, grid-less pallas_call doing `num_steps` sequential SGD steps.

    xs: (num_steps, B, D_in), ts: (num_steps, B, D_out),
    w: (D_in, D_out), b: (1, D_out).
    Returns (per-step losses (num_steps,), updated w, updated b).
    """
    num_steps, batch, d_in = xs.shape
    _, _, d_out = ts.shape

    # Only the OUTPUT feature axis is padded to the 128-lane width (keeps the
    # W/b stores lane-dense).  d_in stays unpadded: full-array blocks are
    # legal, and the forward matmul then contracts only the logical K.
    # Zero padding keeps the math exact: padded cols of out/diff/g and of
    # dW/db stay zero across all steps.
    d_out_p = _round_up(d_out, LANE)
    ts_p = jnp.pad(ts, ((0, 0), (0, 0), (0, d_out_p - d_out)))
    w_p = jnp.pad(w, ((0, 0), (0, d_out_p - d_out)))
    b_p = jnp.pad(b, ((0, 0), (0, d_out_p - d_out)))

    n_elems = float(batch * d_out)   # logical MSE denominator
    kernel = functools.partial(_train_kernel, num_steps, n_elems, float(lr))

    losses, w_new_p, b_new_p = pl.pallas_call(
        kernel,
        in_specs=[
            pl.BlockSpec(memory_space=pltpu.MemorySpace.VMEM),   # xs (whole)
            pl.BlockSpec(memory_space=pltpu.MemorySpace.VMEM),   # ts (whole)
            pl.BlockSpec(memory_space=pltpu.MemorySpace.VMEM),   # W
            pl.BlockSpec(memory_space=pltpu.MemorySpace.VMEM),   # b
        ],
        out_specs=(
            pl.BlockSpec(memory_space=pltpu.MemorySpace.SMEM),   # per-step loss
            pl.BlockSpec(memory_space=pltpu.MemorySpace.VMEM),   # updated W
            pl.BlockSpec(memory_space=pltpu.MemorySpace.VMEM),   # updated b
        ),
        out_shape=(
            jax.ShapeDtypeStruct((num_steps,), jnp.float32),
            jax.ShapeDtypeStruct((d_in, d_out_p), jnp.float32),
            jax.ShapeDtypeStruct((1, d_out_p), jnp.float32),
        ),
        # Update the parameter buffers in place (inputs 2/3 -> outputs 1/2).
        # Safe: w_p/b_p are fresh pad results created inside this jit.
        input_output_aliases={2: 1, 3: 2},
    )(xs, ts_p, w_p, b_p)

    # Strip padding back to the logical parameter shapes (fused under jit).
    return losses, w_new_p[:, :d_out], b_new_p[:, :d_out]


# ------------------------------- main --------------------------------------
if __name__ == "__main__":
    key = jax.random.PRNGKey(0)
    kx, kt, kw, kb = jax.random.split(key, 4)

    # deterministic synthetic data / parameters (small, module-consistent)
    xs = jax.random.normal(kx, (NUM_STEPS, BATCH, D_IN), dtype=jnp.float32)
    ts = jax.random.normal(kt, (NUM_STEPS, BATCH, D_OUT), dtype=jnp.float32)
    w0 = jax.random.normal(kw, (D_IN, D_OUT), dtype=jnp.float32) * 0.1
    b0 = jax.random.normal(kb, (1, D_OUT), dtype=jnp.float32) * 0.1

    losses, w_new, b_new = fused_train_steps(xs, ts, w0, b0)
    jax.block_until_ready((losses, w_new, b_new))

    # pure-JAX reference: replay the same SGD steps sequentially
    w_ref, b_ref = w0, b0
    ref_losses = []
    n = BATCH * D_OUT
    for s in range(NUM_STEPS):
        out = xs[s] @ w_ref + b_ref
        diff = out - ts[s]
        ref_losses.append(jnp.mean(diff * diff))
        g = 2.0 * diff / n
        w_ref = w_ref - LR * (xs[s].T @ g)
        b_ref = b_ref - LR * jnp.sum(g, axis=0, keepdims=True)
    ref_losses = jnp.stack(ref_losses)

    assert jnp.allclose(losses, ref_losses, atol=1e-5, rtol=1e-5), (losses, ref_losses)
    assert jnp.allclose(w_new, w_ref, atol=1e-5, rtol=1e-5)
    assert jnp.allclose(b_new, b_ref, atol=1e-5, rtol=1e-5)

    # TODO(synk): the PyTorch module's load()/save() (pickle checkpoint I/O)
    # and the unspecified "quantlstm" model it wraps have no Pallas equivalent.
    print("KERNEL_OK")
</pallas_src>

<mosaic_0001>
module attributes {stable_mosaic.version = 11 : i64} {
  func.func @_train_kernel(%arg0: memref<4x8x32xf32, #tpu.memory_space<vmem>>, %arg1: memref<4x8x128xf32, #tpu.memory_space<vmem>>, %arg2: memref<32x128xf32, #tpu.memory_space<vmem>>, %arg3: memref<1x128xf32, #tpu.memory_space<vmem>>, %arg4: memref<4xf32, #tpu.memory_space<smem>>, %arg5: memref<32x128xf32, #tpu.memory_space<vmem>>, %arg6: memref<1x128xf32, #tpu.memory_space<vmem>>) attributes {dimension_semantics = [], scalar_prefetch = 0 : i64, scratch_operands = 0 : i64, tpu.core_type = #tpu.core_type<tc>} {
    %c0 = arith.constant 0 : index
    %c0_0 = arith.constant 0 : index
    %0 = vector.load %arg2[%c0, %c0_0] : memref<32x128xf32, #tpu.memory_space<vmem>>, vector<32x128xf32>
    %c0_1 = arith.constant 0 : index
    %c0_2 = arith.constant 0 : index
    %1 = vector.load %arg3[%c0_1, %c0_2] : memref<1x128xf32, #tpu.memory_space<vmem>>, vector<1x128xf32>
    %c0_3 = arith.constant 0 : index
    %c0_4 = arith.constant 0 : index
    %c0_5 = arith.constant 0 : index
    %2 = vector.load %arg0[%c0_3, %c0_4, %c0_5] : memref<4x8x32xf32, #tpu.memory_space<vmem>>, vector<1x8x32xf32>
    %3 = vector.shape_cast %2 : vector<1x8x32xf32> to vector<8x32xf32>
    %c0_6 = arith.constant 0 : index
    %c0_7 = arith.constant 0 : index
    %c0_8 = arith.constant 0 : index
    %4 = vector.load %arg1[%c0_6, %c0_7, %c0_8] : memref<4x8x128xf32, #tpu.memory_space<vmem>>, vector<1x8x128xf32>
    %5 = vector.shape_cast %4 : vector<1x8x128xf32> to vector<8x128xf32>
    %cst = arith.constant dense<0.000000e+00> : vector<8x128xf32>
    %6 = tpu.matmul %3, %0, %cst {dimension_numbers = #tpu.dot_dimension_numbers<[1], [0], [0], [1], [0, 0, 1, 1], [], []>} : vector<8x32xf32>, vector<32x128xf32>, vector<8x128xf32> -> vector<8x128xf32>
    %7 = vector.broadcast %1 : vector<1x128xf32> to vector<8x128xf32>
    %8 = arith.addf %6, %7 : vector<8x128xf32>
    %9 = arith.subf %8, %5 : vector<8x128xf32>
    %10 = arith.mulf %9, %9 : vector<8x128xf32>
    %11 = vector.shape_cast %10 : vector<8x128xf32> to vector<1x8x128xf32>
    %cst_9 = arith.constant dense<0.000000e+00> : vector<1xf32>
    %12 = vector.multi_reduction <add>, %11, %cst_9 [1, 2] : vector<1x8x128xf32> to vector<1xf32>
    %13 = vector.shape_cast %12 : vector<1xf32> to vector<1x1x1xf32>
    %14 = vector.extract %13[0, 0, 0] : f32 from vector<1x1x1xf32>
    %cst_10 = arith.constant 7.812500e-03 : f32
    %15 = arith.mulf %14, %cst_10 : f32
    %c0_11 = arith.constant 0 : index
    %16 = memref.load %arg4[%c0_11] : memref<4xf32, #tpu.memory_space<smem>>
    memref.store %15, %arg4[%c0_11] : memref<4xf32, #tpu.memory_space<smem>>
    %cst_12 = arith.constant 1.562500e-02 : f32
    %17 = vector.broadcast %cst_12 : f32 to vector<8x128xf32>
    %18 = arith.mulf %9, %17 : vector<8x128xf32>
    %cst_13 = arith.constant dense<0.000000e+00> : vector<32x128xf32>
    %19 = tpu.matmul %3, %18, %cst_13 {dimension_numbers = #tpu.dot_dimension_numbers<[0], [0], [1], [1], [0, 1, 1, 1], [], []>} : vector<8x32xf32>, vector<8x128xf32>, vector<32x128xf32> -> vector<32x128xf32>
    %cst_14 = arith.constant dense<0.000000e+00> : vector<128xf32>
    %20 = vector.multi_reduction <add>, %18, %cst_14 [0] : vector<8x128xf32> to vector<128xf32>
    %21 = vector.shape_cast %20 : vector<128xf32> to vector<1x128xf32>
    %cst_15 = arith.constant 1.000000e-01 : f32
    %22 = vector.broadcast %cst_15 : f32 to vector<32x128xf32>
    %23 = arith.mulf %22, %19 : vector<32x128xf32>
    %24 = arith.subf %0, %23 : vector<32x128xf32>
    %cst_16 = arith.constant 1.000000e-01 : f32
    %25 = vector.broadcast %cst_16 : f32 to vector<1x128xf32>
    %26 = arith.mulf %25, %21 : vector<1x128xf32>
    %27 = arith.subf %1, %26 : vector<1x128xf32>
    %c1 = arith.constant 1 : index
    %c0_17 = arith.constant 0 : index
    %c0_18 = arith.constant 0 : index
    %28 = vector.load %arg0[%c1, %c0_17, %c0_18] : memref<4x8x32xf32, #tpu.memory_space<vmem>>, vector<1x8x32xf32>
    %29 = vector.shape_cast %28 : vector<1x8x32xf32> to vector<8x32xf32>
    %c1_19 = arith.constant 1 : index
    %c0_20 = arith.constant 0 : index
    %c0_21 = arith.constant 0 : index
    %30 = vector.load %arg1[%c1_19, %c0_20, %c0_21] : memref<4x8x128xf32, #tpu.memory_space<vmem>>, vector<1x8x128xf32>
    %31 = vector.shape_cast %30 : vector<1x8x128xf32> to vector<8x128xf32>
    %cst_22 = arith.constant dense<0.000000e+00> : vector<8x128xf32>
    %32 = tpu.matmul %29, %24, %cst_22 {dimension_numbers = #tpu.dot_dimension_numbers<[1], [0], [0], [1], [0, 0, 1, 1], [], []>} : vector<8x32xf32>, vector<32x128xf32>, vector<8x128xf32> -> vector<8x128xf32>
    %33 = vector.broadcast %27 : vector<1x128xf32> to vector<8x128xf32>
    %34 = arith.addf %32, %33 : vector<8x128xf32>
    %35 = arith.subf %34, %31 : vector<8x128xf32>
    %36 = arith.mulf %35, %35 : vector<8x128xf32>
    %37 = vector.shape_cast %36 : vector<8x128xf32> to vector<1x8x128xf32>
    %cst_23 = arith.constant dense<0.000000e+00> : vector<1xf32>
    %38 = vector.multi_reduction <add>, %37, %cst_23 [1, 2] : vector<1x8x128xf32> to vector<1xf32>
    %39 = vector.shape_cast %38 : vector<1xf32> to vector<1x1x1xf32>
    %40 = vector.extract %39[0, 0, 0] : f32 from vector<1x1x1xf32>
    %cst_24 = arith.constant 7.812500e-03 : f32
    %41 = arith.mulf %40, %cst_24 : f32
    %c1_25 = arith.constant 1 : index
    %42 = memref.load %arg4[%c1_25] : memref<4xf32, #tpu.memory_space<smem>>
    memref.store %41, %arg4[%c1_25] : memref<4xf32, #tpu.memory_space<smem>>
    %cst_26 = arith.constant 1.562500e-02 : f32
    %43 = vector.broadcast %cst_26 : f32 to vector<8x128xf32>
    %44 = arith.mulf %35, %43 : vector<8x128xf32>
    %cst_27 = arith.constant dense<0.000000e+00> : vector<32x128xf32>
    %45 = tpu.matmul %29, %44, %cst_27 {dimension_numbers = #tpu.dot_dimension_numbers<[0], [0], [1], [1], [0, 1, 1, 1], [], []>} : vector<8x32xf32>, vector<8x128xf32>, vector<32x128xf32> -> vector<32x128xf32>
    %cst_28 = arith.constant dense<0.000000e+00> : vector<128xf32>
    %46 = vector.multi_reduction <add>, %44, %cst_28 [0] : vector<8x128xf32> to vector<128xf32>
    %47 = vector.shape_cast %46 : vector<128xf32> to vector<1x128xf32>
    %cst_29 = arith.constant 1.000000e-01 : f32
    %48 = vector.broadcast %cst_29 : f32 to vector<32x128xf32>
    %49 = arith.mulf %48, %45 : vector<32x128xf32>
    %50 = arith.subf %24, %49 : vector<32x128xf32>
    %cst_30 = arith.constant 1.000000e-01 : f32
    %51 = vector.broadcast %cst_30 : f32 to vector<1x128xf32>
    %52 = arith.mulf %51, %47 : vector<1x128xf32>
    %53 = arith.subf %27, %52 : vector<1x128xf32>
    %c2 = arith.constant 2 : index
    %c0_31 = arith.constant 0 : index
    %c0_32 = arith.constant 0 : index
    %54 = vector.load %arg0[%c2, %c0_31, %c0_32] : memref<4x8x32xf32, #tpu.memory_space<vmem>>, vector<1x8x32xf32>
    %55 = vector.shape_cast %54 : vector<1x8x32xf32> to vector<8x32xf32>
    %c2_33 = arith.constant 2 : index
    %c0_34 = arith.constant 0 : index
    %c0_35 = arith.constant 0 : index
    %56 = vector.load %arg1[%c2_33, %c0_34, %c0_35] : memref<4x8x128xf32, #tpu.memory_space<vmem>>, vector<1x8x128xf32>
    %57 = vector.shape_cast %56 : vector<1x8x128xf32> to vector<8x128xf32>
    %cst_36 = arith.constant dense<0.000000e+00> : vector<8x128xf32>
    %58 = tpu.matmul %55, %50, %cst_36 {dimension_numbers = #tpu.dot_dimension_numbers<[1], [0], [0], [1], [0, 0, 1, 1], [], []>} : vector<8x32xf32>, vector<32x128xf32>, vector<8x128xf32> -> vector<8x128xf32>
    %59 = vector.broadcast %53 : vector<1x128xf32> to vector<8x128xf32>
    %60 = arith.addf %58, %59 : vector<8x128xf32>
    %61 = arith.subf %60, %57 : vector<8x128xf32>
    %62 = arith.mulf %61, %61 : vector<8x128xf32>
    %63 = vector.shape_cast %62 : vector<8x128xf32> to vector<1x8x128xf32>
    %cst_37 = arith.constant dense<0.000000e+00> : vector<1xf32>
    %64 = vector.multi_reduction <add>, %63, %cst_37 [1, 2] : vector<1x8x128xf32> to vector<1xf32>
    %65 = vector.shape_cast %64 : vector<1xf32> to vector<1x1x1xf32>
    %66 = vector.extract %65[0, 0, 0] : f32 from vector<1x1x1xf32>
    %cst_38 = arith.constant 7.812500e-03 : f32
    %67 = arith.mulf %66, %cst_38 : f32
    %c2_39 = arith.constant 2 : index
    %68 = memref.load %arg4[%c2_39] : memref<4xf32, #tpu.memory_space<smem>>
    memref.store %67, %arg4[%c2_39] : memref<4xf32, #tpu.memory_space<smem>>
    %cst_40 = arith.constant 1.562500e-02 : f32
    %69 = vector.broadcast %cst_40 : f32 to vector<8x128xf32>
    %70 = arith.mulf %61, %69 : vector<8x128xf32>
    %cst_41 = arith.constant dense<0.000000e+00> : vector<32x128xf32>
    %71 = tpu.matmul %55, %70, %cst_41 {dimension_numbers = #tpu.dot_dimension_numbers<[0], [0], [1], [1], [0, 1, 1, 1], [], []>} : vector<8x32xf32>, vector<8x128xf32>, vector<32x128xf32> -> vector<32x128xf32>
    %cst_42 = arith.constant dense<0.000000e+00> : vector<128xf32>
    %72 = vector.multi_reduction <add>, %70, %cst_42 [0] : vector<8x128xf32> to vector<128xf32>
    %73 = vector.shape_cast %72 : vector<128xf32> to vector<1x128xf32>
    %cst_43 = arith.constant 1.000000e-01 : f32
    %74 = vector.broadcast %cst_43 : f32 to vector<32x128xf32>
    %75 = arith.mulf %74, %71 : vector<32x128xf32>
    %76 = arith.subf %50, %75 : vector<32x128xf32>
    %cst_44 = arith.constant 1.000000e-01 : f32
    %77 = vector.broadcast %cst_44 : f32 to vector<1x128xf32>
    %78 = arith.mulf %77, %73 : vector<1x128xf32>
    %79 = arith.subf %53, %78 : vector<1x128xf32>
    %c3 = arith.constant 3 : index
    %c0_45 = arith.constant 0 : index
    %c0_46 = arith.constant 0 : index
    %80 = vector.load %arg0[%c3, %c0_45, %c0_46] : memref<4x8x32xf32, #tpu.memory_space<vmem>>, vector<1x8x32xf32>
    %81 = vector.shape_cast %80 : vector<1x8x32xf32> to vector<8x32xf32>
    %c3_47 = arith.constant 3 : index
    %c0_48 = arith.constant 0 : index
    %c0_49 = arith.constant 0 : index
    %82 = vector.load %arg1[%c3_47, %c0_48, %c0_49] : memref<4x8x128xf32, #tpu.memory_space<vmem>>, vector<1x8x128xf32>
    %83 = vector.shape_cast %82 : vector<1x8x128xf32> to vector<8x128xf32>
    %cst_50 = arith.constant dense<0.000000e+00> : vector<8x128xf32>
    %84 = tpu.matmul %81, %76, %cst_50 {dimension_numbers = #tpu.dot_dimension_numbers<[1], [0], [0], [1], [0, 0, 1, 1], [], []>} : vector<8x32xf32>, vector<32x128xf32>, vector<8x128xf32> -> vector<8x128xf32>
    %85 = vector.broadcast %79 : vector<1x128xf32> to vector<8x128xf32>
    %86 = arith.addf %84, %85 : vector<8x128xf32>
    %87 = arith.subf %86, %83 : vector<8x128xf32>
    %88 = arith.mulf %87, %87 : vector<8x128xf32>
    %89 = vector.shape_cast %88 : vector<8x128xf32> to vector<1x8x128xf32>
    %cst_51 = arith.constant dense<0.000000e+00> : vector<1xf32>
    %90 = vector.multi_reduction <add>, %89, %cst_51 [1, 2] : vector<1x8x128xf32> to vector<1xf32>
    %91 = vector.shape_cast %90 : vector<1xf32> to vector<1x1x1xf32>
    %92 = vector.extract %91[0, 0, 0] : f32 from vector<1x1x1xf32>
    %cst_52 = arith.constant 7.812500e-03 : f32
    %93 = arith.mulf %92, %cst_52 : f32
    %c3_53 = arith.constant 3 : index
    %94 = memref.load %arg4[%c3_53] : memref<4xf32, #tpu.memory_space<smem>>
    memref.store %93, %arg4[%c3_53] : memref<4xf32, #tpu.memory_space<smem>>
    %cst_54 = arith.constant 1.562500e-02 : f32
    %95 = vector.broadcast %cst_54 : f32 to vector<8x128xf32>
    %96 = arith.mulf %87, %95 : vector<8x128xf32>
    %cst_55 = arith.constant dense<0.000000e+00> : vector<32x128xf32>
    %97 = tpu.matmul %81, %96, %cst_55 {dimension_numbers = #tpu.dot_dimension_numbers<[0], [0], [1], [1], [0, 1, 1, 1], [], []>} : vector<8x32xf32>, vector<8x128xf32>, vector<32x128xf32> -> vector<32x128xf32>
    %cst_56 = arith.constant dense<0.000000e+00> : vector<128xf32>
    %98 = vector.multi_reduction <add>, %96, %cst_56 [0] : vector<8x128xf32> to vector<128xf32>
    %99 = vector.shape_cast %98 : vector<128xf32> to vector<1x128xf32>
    %cst_57 = arith.constant 1.000000e-01 : f32
    %100 = vector.broadcast %cst_57 : f32 to vector<32x128xf32>
    %101 = arith.mulf %100, %97 : vector<32x128xf32>
    %102 = arith.subf %76, %101 : vector<32x128xf32>
    %cst_58 = arith.constant 1.000000e-01 : f32
    %103 = vector.broadcast %cst_58 : f32 to vector<1x128xf32>
    %104 = arith.mulf %103, %99 : vector<1x128xf32>
    %105 = arith.subf %79, %104 : vector<1x128xf32>
    %c0_59 = arith.constant 0 : index
    %c0_60 = arith.constant 0 : index
    %106 = vector.load %arg5[%c0_59, %c0_60] : memref<32x128xf32, #tpu.memory_space<vmem>>, vector<32x128xf32>
    tpu.vector_store %arg5[%c0_59, %c0_60], %102 {strides = array<i32>} : memref<32x128xf32, #tpu.memory_space<vmem>>, vector<32x128xf32>,
    %c0_61 = arith.constant 0 : index
    %c0_62 = arith.constant 0 : index
    %107 = vector.load %arg6[%c0_61, %c0_62] : memref<1x128xf32, #tpu.memory_space<vmem>>, vector<1x128xf32>
    tpu.vector_store %arg6[%c0_61, %c0_62], %105 {strides = array<i32>} : memref<1x128xf32, #tpu.memory_space<vmem>>, vector<1x128xf32>,
    return
  }
}

</mosaic_0001>

<llo_original>
// kernel: fused_train_steps.1
$region0: #{fused_train_steps.1}
  #allocation0 [shape = 'u32[]', space=smem, size = 0x4, offset = 0x4, fixed_abs, tag = 'smem constant byte address 0x4 - core index']
  #allocation1 [shape = 'u32[144,128]{1,0:T(1,128)}', space=vmem, size = 0x12000, scoped, tag = 'internal scratch']
  %s0 = inlined_call_operand.vmem [shape: f32[4,8,32], index: 0, kind: input, shape index: {}]
  %s1 = inlined_call_operand.vmem [shape: f32[4,8,128], index: 1, kind: input, shape index: {}]
  %s2 = inlined_call_operand.vmem [shape: f32[32,128], index: 2, kind: input, shape index: {}, may-alias: {2,5}]
  %s3 = inlined_call_operand.vmem [shape: f32[1,128], index: 3, kind: input, shape index: {}, may-alias: {3,6}]
  %s4 = inlined_call_operand.hbm [shape: f32[4], index: 4, kind: output, shape index: {0}]
  %s5 = inlined_call_operand.vmem [shape: f32[32,128], index: 5, kind: output, shape index: {1}, may-alias: {2,5}]
  %s6 = inlined_call_operand.vmem [shape: f32[1,128], index: 6, kind: output, shape index: {2}, may-alias: {3,6}]
  %7 = xla_tuple %s4, %s5, %s6
  %s8 = sld [smem:[#allocation0]]
  $region42: #{fused_train_steps.1} parent=0
    _
  %s10 = ssub.s32 1, %s8
  %s11 = scalar_select 0, %s10, %s8
  $region1: #{fused_train_steps.1} parent=0
    #allocation2 [shape = 'u8[512]{0}', space=smem, size = 0x200, scoped, tag = 'output window, operand 0, single buffered']
    #allocation3 [shape = 's32[1]{0}', space=sflag, size = 0x4, scoped, tag = 'scoped memory for fused_train_steps.1']
    %12 = vsyncpa [#allocation3], 0
    // Predicated region
    $region2: #{fused_train_steps.1} parent=1 // pred_check
      _
    $region3: #{fused_train_steps.1} parent=1 // pred_check_branch
      %14 = sbr.rel (0) target = $region5
    $region4: #{fused_train_steps.1} parent=1 // pred_region
      _
    $region5: #{fused_train_steps.1} parent=1 // pred_fallthru
      _
    // Predicated region
    $region6: #{fused_train_steps.1} parent=1 // pred_check
      _
    $region7: #{fused_train_steps.1} parent=1 // pred_check_branch
      %16 = sbr.rel (0) target = $region9
    $region8: #{fused_train_steps.1} parent=1 // pred_region
      _
    $region9: #{fused_train_steps.1} parent=1 // pred_fallthru
      _
    // Predicated region
    $region10: #{fused_train_steps.1} parent=1 // pred_check
      _
    $region11: #{fused_train_steps.1} parent=1 // pred_check_branch
      %18 = sbr.rel (0) target = $region13
    $region12: #{fused_train_steps.1} parent=1 // pred_region
      _
    $region13: #{fused_train_steps.1} parent=1 // pred_fallthru
      _
    // Predicated region
    $region14: #{fused_train_steps.1} parent=1 // pred_check
      _
    $region15: #{fused_train_steps.1} parent=1 // pred_check_branch
      %20 = sbr.rel (0) target = $region17
    $region16: #{fused_train_steps.1} parent=1 // pred_region
      _
    $region17: #{fused_train_steps.1} parent=1 // pred_fallthru
      _
    %v21 = vld [vmem:[%s2] sm:$0xff]
    %v22 = vld [vmem:[%s2 + $0x8] sm:$0xff]
    %v23 = vld [vmem:[%s2 + $0x10] sm:$0xff]
    %v24 = vld [vmem:[%s2 + $0x18] sm:$0xff]
    %v25 = vld [vmem:[%s3] sm:$0x1]
    %v26 = vld [vmem:[%s0] sm:$0xff]
    %v27 = vld [vmem:[%s1] sm:$0xff]
    %v29 = vlaneseq
    %v30 = vshrl.u32 %v29, 7
    %v31 = vsub.s32 0, %v30
    %v32 = vrot.slane %v25, %v31
    %vm34 = vcmask 261120
    %v36 = vsel %vm34, %v26, 0
    %38 = vmatprep.subr.mxu0 0.0
    %39 = vmatpush1.msra.mxu0 %v21
    %40 = vmatprep.subr.mxu0 0.0
    %41 = vmatpush1.msra.mxu0 %v22
    %42 = vmatprep.subr.mxu0 0.0
    %43 = vmatpush1.msra.mxu0 %v23
    %44 = vmatprep.subr.mxu0 0.0
    %45 = vmatpush1.msra.mxu0 %v24
    %46 = vmatprep.subr.mxu0 0.0
    %47 = vmatpush1.msra.mxu0 0.0
    %48 = vmatprep.subr.mxu0 0.0
    %49 = vmatpush1.msra.mxu0 0.0
    %50 = vmatprep.subr.mxu0 0.0
    %51 = vmatpush1.msra.mxu0 0.0
    %52 = vmatprep.subr.mxu0 0.0
    %53 = vmatpush1.msra.mxu0 0.0
    %54 = vmatprep.subr.mxu0 0.0
    %55 = vmatpush1.msra.mxu0 0.0
    %56 = vmatprep.subr.mxu0 0.0
    %57 = vmatpush1.msra.mxu0 0.0
    %58 = vmatprep.subr.mxu0 0.0
    %59 = vmatpush1.msra.mxu0 0.0
    %60 = vmatprep.subr.mxu0 0.0
    %61 = vmatpush1.msra.mxu0 0.0
    %62 = vmatprep.subr.mxu0 0.0
    %63 = vmatpush1.msra.mxu0 0.0
    %64 = vmatprep.subr.mxu0 0.0
    %65 = vmatpush1.msra.mxu0 0.0
    %66 = vmatprep.subr.mxu0 0.0
    %67 = vmatpush1.msra.mxu0 0.0
    %68 = vmatprep.subr.mxu0 0.0
    %69 = vmatpush1.msra.mxu0 0.0
    %70 = vmatprep.subr.mxu0 0.0
    %71 = vmatpush1.msra.mxu0 0.0
    %72 = vmatprep.subr.mxu0 0.0
    %73 = vmatpush1.msra.mxu0 0.0
    %74 = vmatprep.subr.mxu0 0.0
    %75 = vmatpush1.msra.mxu0 0.0
    %76 = vmatprep.subr.mxu0 0.0
    %77 = vmatpush1.msra.mxu0 0.0
    %78 = vmatprep.subr.mxu0 0.0
    %79 = vmatpush1.msra.mxu0 0.0
    %80 = vmatprep.subr.mxu0 0.0
    %81 = vmatpush1.msra.mxu0 0.0
    %82 = vmatprep.subr.mxu0 0.0
    %83 = vmatpush1.msra.mxu0 0.0
    %84 = vmatprep.subr.mxu0 0.0
    %85 = vmatpush1.msra.mxu0 0.0
    %86 = vmatprep.subr.mxu0 0.0
    %87 = vmatpush1.msra.mxu0 0.0
    %88 = vmatprep.subr.mxu0 0.0
    %89 = vmatpush1.msra.mxu0 0.0
    %90 = vmatprep.subr.mxu0 0.0
    %91 = vmatpush1.msra.mxu0 0.0
    %92 = vmatprep.subr.mxu0 0.0
    %93 = vmatpush1.msra.mxu0 0.0
    %94 = vmatprep.subr.mxu0 0.0
    %95 = vmatpush1.msra.mxu0 0.0
    %96 = vmatprep.subr.mxu0 0.0
    %97 = vmatpush1.msra.mxu0 0.0
    %98 = vmatprep.subr.mxu0 0.0
    %99 = vmatpush1.msra.mxu0 0.0
    %100 = vmatprep.subr.mxu0 0.0
    %101 = vmatpush1.msra.mxu0 0.0
    %102 = vmatprep.mubr.f32.mxu0 0.0
    %103 = vmatmul.mubr.f32.gmra.mrb[0].mxu0 %v36
    %v104 = vpop.f32.mrb[0].mxu0
    %v105 = vadd.f32 %v32, %v104
    %v106 = vpop.f32.mrb[0].mxu0
    %107 = vdwg.mxu0
    %v108 = vsub.f32 %v105, %v27
    %v109 = vmul.f32 %v108, %v108
    %110 = vadd.xlane.f32.xlu0 %v109
    %v111 = vpop.xlane.xlu0 %110
    %v112 = vrot.slane %v111, 4
    %v113 = vadd.f32 %v111, %v112
    %v114 = vrot.slane %v113, 2
    %v115 = vadd.f32 %v113, %v114
    %v116 = vrot.slane %v115, 1
    %v117 = vadd.f32 %v115, %v116
    %s118 = vtos %v117
    %s119 = smul.f32 %s118, 0.0078125
    %s120 = scalar_lea.smem [#allocation2], 0
    %121 = sst [smem:[%s120]] %s119
    %v122 = vmul.f32 %v108, 0.015625
    %123 = vxpose.xlu0.b32.start [1/16] %v26, 128
    %124 = vxpose.xlu0.b32.cont [2/16] 0.0, 128
    %125 = vxpose.xlu0.b32.cont [3/16] 0.0, 128
    %126 = vxpose.xlu0.b32.cont [4/16] 0.0, 128
    %127 = vxpose.xlu0.b32.cont [5/16] 0.0, 128
    %128 = vxpose.xlu0.b32.cont [6/16] 0.0, 128
    %129 = vxpose.xlu0.b32.cont [7/16] 0.0, 128
    %130 = vxpose.xlu0.b32.cont [8/16] 0.0, 128
    %131 = vxpose.xlu0.b32.cont [9/16] 0.0, 128
    %132 = vxpose.xlu0.b32.cont [10/16] 0.0, 128
    %133 = vxpose.xlu0.b32.cont [11/16] 0.0, 128
    %134 = vxpose.xlu0.b32.cont [12/16] 0.0, 128
    %135 = vxpose.xlu0.b32.cont [13/16] 0.0, 128
    %136 = vxpose.xlu0.b32.cont [14/16] 0.0, 128
    %137 = vxpose.xlu0.b32.cont [15/16] 0.0, 128
    %138 = vxpose.xlu0.b32.end [16/16] 0.0, 128
    %v139 = vpop.trf.xlu0
    %v140 = vpop.trf.xlu0
    %v141 = vpop.trf.xlu0
    %v142 = vpop.trf.xlu0
    %v143 = vpop.trf.xlu0
    %v144 = vpop.trf.xlu0
    %v145 = vpop.trf.xlu0
    %v146 = vpop.trf.xlu0
    %v147 = vpop.trf.xlu0
    %v148 = vpop.trf.xlu0
    %v149 = vpop.trf.xlu0
    %v150 = vpop.trf.xlu0
    %v151 = vpop.trf.xlu0
    %v152 = vpop.trf.xlu0
    %v153 = vpop.trf.xlu0
    %v154 = vpop.trf.xlu0
    %vm155 = vcmask 64512
    %v157 = vsel %vm155, %v139, 0
    %v160 = vsel %vm155, %v140, 0
    %v163 = vsel %vm155, %v141, 0
    %v166 = vsel %vm155, %v142, 0
    %168 = vmatprep.subr.mxu0 0.0
    %169 = vmatpush1.msra.mxu0 %v122
    %170 = vmatprep.subr.mxu0 0.0
    %171 = vmatpush1.msra.mxu0 0.0
    %172 = vmatprep.subr.mxu0 0.0
    %173 = vmatpush1.msra.mxu0 0.0
    %174 = vmatprep.subr.mxu0 0.0
    %175 = vmatpush1.msra.mxu0 0.0
    %176 = vmatprep.subr.mxu0 0.0
    %177 = vmatpush1.msra.mxu0 0.0
    %178 = vmatprep.subr.mxu0 0.0
    %179 = vmatpush1.msra.mxu0 0.0
    %180 = vmatprep.subr.mxu0 0.0
    %181 = vmatpush1.msra.mxu0 0.0
    %182 = vmatprep.subr.mxu0 0.0
    %183 = vmatpush1.msra.mxu0 0.0
    %184 = vmatprep.subr.mxu0 0.0
    %185 = vmatpush1.msra.mxu0 0.0
    %186 = vmatprep.subr.mxu0 0.0
    %187 = vmatpush1.msra.mxu0 0.0
    %188 = vmatprep.subr.mxu0 0.0
    %189 = vmatpush1.msra.mxu0 0.0
    %190 = vmatprep.subr.mxu0 0.0
    %191 = vmatpush1.msra.mxu0 0.0
    %192 = vmatprep.subr.mxu0 0.0
    %193 = vmatpush1.msra.mxu0 0.0
    %194 = vmatprep.subr.mxu0 0.0
    %195 = vmatpush1.msra.mxu0 0.0
    %196 = vmatprep.subr.mxu0 0.0
    %197 = vmatpush1.msra.mxu0 0.0
    %198 = vmatprep.subr.mxu0 0.0
    %199 = vmatpush1.msra.mxu0 0.0
    %200 = vmatprep.subr.mxu0 0.0
    %201 = vmatpush1.msra.mxu0 0.0
    %202 = vmatprep.subr.mxu0 0.0
    %203 = vmatpush1.msra.mxu0 0.0
    %204 = vmatprep.subr.mxu0 0.0
    %205 = vmatpush1.msra.mxu0 0.0
    %206 = vmatprep.subr.mxu0 0.0
    %207 = vmatpush1.msra.mxu0 0.0
    %208 = vmatprep.subr.mxu0 0.0
    %209 = vmatpush1.msra.mxu0 0.0
    %210 = vmatprep.subr.mxu0 0.0
    %211 = vmatpush1.msra.mxu0 0.0
    %212 = vmatprep.subr.mxu0 0.0
    %213 = vmatpush1.msra.mxu0 0.0
    %214 = vmatprep.subr.mxu0 0.0
    %215 = vmatpush1.msra.mxu0 0.0
    %216 = vmatprep.subr.mxu0 0.0
    %217 = vmatpush1.msra.mxu0 0.0
    %218 = vmatprep.subr.mxu0 0.0
    %219 = vmatpush1.msra.mxu0 0.0
    %220 = vmatprep.subr.mxu0 0.0
    %221 = vmatpush1.msra.mxu0 0.0
    %222 = vmatprep.subr.mxu0 0.0
    %223 = vmatpush1.msra.mxu0 0.0
    %224 = vmatprep.subr.mxu0 0.0
    %225 = vmatpush1.msra.mxu0 0.0
    %226 = vmatprep.subr.mxu0 0.0
    %227 = vmatpush1.msra.mxu0 0.0
    %228 = vmatprep.subr.mxu0 0.0
    %229 = vmatpush1.msra.mxu0 0.0
    %230 = vmatprep.subr.mxu0 0.0
    %231 = vmatpush1.msra.mxu0 0.0
    %232 = vmatprep.mubr.f32.mxu0 0.0
    %233 = vmatmul.mubr.f32.gmra.mrb[0].mxu0 %v157
    %v234 = vpop.f32.mrb[0].mxu0
    %v235 = vadd.f32 0.0, %v234
    %v236 = vpop.f32.mrb[0].mxu0
    %237 = vmatprep.mubr.f32.mxu0 0.0
    %238 = vmatmul.mubr.f32.gmra.mrb[0].mxu0 %v160
    %v239 = vpop.f32.mrb[0].mxu0
    %v240 = vadd.f32 0.0, %v239
    %v241 = vpop.f32.mrb[0].mxu0
    %242 = vmatprep.mubr.f32.mxu0 0.0
    %243 = vmatmul.mubr.f32.gmra.mrb[0].mxu0 %v163
    %v244 = vpop.f32.mrb[0].mxu0
    %v245 = vadd.f32 0.0, %v244
    %v246 = vpop.f32.mrb[0].mxu0
    %247 = vmatprep.mubr.f32.mxu0 0.0
    %248 = vmatmul.mubr.f32.gmra.mrb[0].mxu0 %v166
    %v249 = vpop.f32.mrb[0].mxu0
    %v250 = vadd.f32 0.0, %v249
    %v251 = vpop.f32.mrb[0].mxu0
    %252 = vdwg.mxu0
    %v253 = vrot.slane %v122, 4
    %v254 = vadd.f32 %v122, %v253
    %v255 = vrot.slane %v254, 2
    %v256 = vadd.f32 %v254, %v255
    %v257 = vrot.slane %v256, 1
    %v258 = vadd.f32 %v256, %v257
    %v259 = vmul.f32 %v235, 0.1
    %v260 = vmul.f32 %v240, 0.1
    %v261 = vmul.f32 %v245, 0.1
    %v262 = vmul.f32 %v250, 0.1
    %v263 = vsub.f32 %v21, %v259
    %v264 = vsub.f32 %v22, %v260
    %v265 = vsub.f32 %v23, %v261
    %v266 = vsub.f32 %v24, %v262
    %v267 = vmul.f32 %v258, 0.1
    %v268 = vsub.f32 %v25, %v267
    %s269 = scalar_lea.vmem %s0, 8
    %v270 = vld [vmem:[%s269] sm:$0xff]
    %s271 = scalar_lea.vmem %s1, 8
    %v272 = vld [vmem:[%s271] sm:$0xff]
    %v274 = vlaneseq
    %v275 = vshrl.u32 %v274, 7
    %v276 = vsub.s32 0, %v275
    %v277 = vrot.slane %v268, %v276
    %v280 = vsel %vm34, %v270, 0
    %282 = vmatprep.subr.mxu0 0.0
    %283 = vmatpush1.msra.mxu0 %v263
    %284 = vmatprep.subr.mxu0 0.0
    %285 = vmatpush1.msra.mxu0 %v264
    %286 = vmatprep.subr.mxu0 0.0
    %287 = vmatpush1.msra.mxu0 %v265
    %288 = vmatprep.subr.mxu0 0.0
    %289 = vmatpush1.msra.mxu0 %v266
    %290 = vmatprep.subr.mxu0 0.0
    %291 = vmatpush1.msra.mxu0 0.0
    %292 = vmatprep.subr.mxu0 0.0
    %293 = vmatpush1.msra.mxu0 0.0
    %294 = vmatprep.subr.mxu0 0.0
    %295 = vmatpush1.msra.mxu0 0.0
    %296 = vmatprep.subr.mxu0 0.0
    %297 = vmatpush1.msra.mxu0 0.0
    %298 = vmatprep.subr.mxu0 0.0
    %299 = vmatpush1.msra.mxu0 0.0
    %300 = vmatprep.subr.mxu0 0.0
    %301 = vmatpush1.msra.mxu0 0.0
    %302 = vmatprep.subr.mxu0 0.0
    %303 = vmatpush1.msra.mxu0 0.0
    %304 = vmatprep.subr.mxu0 0.0
    %305 = vmatpush1.msra.mxu0 0.0
    %306 = vmatprep.subr.mxu0 0.0
    %307 = vmatpush1.msra.mxu0 0.0
    %308 = vmatprep.subr.mxu0 0.0
    %309 = vmatpush1.msra.mxu0 0.0
    %310 = vmatprep.subr.mxu0 0.0
    %311 = vmatpush1.msra.mxu0 0.0
    %312 = vmatprep.subr.mxu0 0.0
    %313 = vmatpush1.msra.mxu0 0.0
    %314 = vmatprep.subr.mxu0 0.0
    %315 = vmatpush1.msra.mxu0 0.0
    %316 = vmatprep.subr.mxu0 0.0
    %317 = vmatpush1.msra.mxu0 0.0
    %318 = vmatprep.subr.mxu0 0.0
    %319 = vmatpush1.msra.mxu0 0.0
    %320 = vmatprep.subr.mxu0 0.0
    %321 = vmatpush1.msra.mxu0 0.0
    %322 = vmatprep.subr.mxu0 0.0
    %323 = vmatpush1.msra.mxu0 0.0
    %324 = vmatprep.subr.mxu0 0.0
    %325 = vmatpush1.msra.mxu0 0.0
    %326 = vmatprep.subr.mxu0 0.0
    %327 = vmatpush1.msra.mxu0 0.0
    %328 = vmatprep.subr.mxu0 0.0
    %329 = vmatpush1.msra.mxu0 0.0
    %330 = vmatprep.subr.mxu0 0.0
    %331 = vmatpush1.msra.mxu0 0.0
    %332 = vmatprep.subr.mxu0 0.0
    %333 = vmatpush1.msra.mxu0 0.0
    %334 = vmatprep.subr.mxu0 0.0
    %335 = vmatpush1.msra.mxu0 0.0
    %336 = vmatprep.subr.mxu0 0.0
    %337 = vmatpush1.msra.mxu0 0.0
    %338 = vmatprep.subr.mxu0 0.0
    %339 = vmatpush1.msra.mxu0 0.0
    %340 = vmatprep.subr.mxu0 0.0
    %341 = vmatpush1.msra.mxu0 0.0
    %342 = vmatprep.subr.mxu0 0.0
    %343 = vmatpush1.msra.mxu0 0.0
    %344 = vmatprep.subr.mxu0 0.0
    %345 = vmatpush1.msra.mxu0 0.0
    %346 = vmatprep.mubr.f32.mxu0 0.0
    %347 = vmatmul.mubr.f32.gmra.mrb[0].mxu0 %v280
    %v348 = vpop.f32.mrb[0].mxu0
    %v349 = vadd.f32 %v277, %v348
    %v350 = vpop.f32.mrb[0].mxu0
    %351 = vdwg.mxu0
    %v352 = vsub.f32 %v349, %v272
    %v353 = vmul.f32 %v352, %v352
    %354 = vadd.xlane.f32.xlu0 %v353
    %v355 = vpop.xlane.xlu0 %354
    %v356 = vrot.slane %v355, 4
    %v357 = vadd.f32 %v355, %v356
    %v358 = vrot.slane %v357, 2
    %v359 = vadd.f32 %v357, %v358
    %v360 = vrot.slane %v359, 1
    %v361 = vadd.f32 %v359, %v360
    %s362 = vtos %v361
    %s363 = smul.f32 %s362, 0.0078125
    %s364 = scalar_lea.smem [#allocation2], 1
    %365 = sst [smem:[%s364]] %s363
    %v366 = vmul.f32 %v352, 0.015625
    %367 = vxpose.xlu0.b32.start [1/16] %v270, 128
    %368 = vxpose.xlu0.b32.cont [2/16] 0.0, 128
    %369 = vxpose.xlu0.b32.cont [3/16] 0.0, 128
    %370 = vxpose.xlu0.b32.cont [4/16] 0.0, 128
    %371 = vxpose.xlu0.b32.cont [5/16] 0.0, 128
    %372 = vxpose.xlu0.b32.cont [6/16] 0.0, 128
    %373 = vxpose.xlu0.b32.cont [7/16] 0.0, 128
    %374 = vxpose.xlu0.b32.cont [8/16] 0.0, 128
    %375 = vxpose.xlu0.b32.cont [9/16] 0.0, 128
    %376 = vxpose.xlu0.b32.cont [10/16] 0.0, 128
    %377 = vxpose.xlu0.b32.cont [11/16] 0.0, 128
    %378 = vxpose.xlu0.b32.cont [12/16] 0.0, 128
    %379 = vxpose.xlu0.b32.cont [13/16] 0.0, 128
    %380 = vxpose.xlu0.b32.cont [14/16] 0.0, 128
    %381 = vxpose.xlu0.b32.cont [15/16] 0.0, 128
    %382 = vxpose.xlu0.b32.end [16/16] 0.0, 128
    %v383 = vpop.trf.xlu0
    %v384 = vpop.trf.xlu0
    %v385 = vpop.trf.xlu0
    %v386 = vpop.trf.xlu0
    %v387 = vpop.trf.xlu0
    %v388 = vpop.trf.xlu0
    %v389 = vpop.trf.xlu0
    %v390 = vpop.trf.xlu0
    %v391 = vpop.trf.xlu0
    %v392 = vpop.trf.xlu0
    %v393 = vpop.trf.xlu0
    %v394 = vpop.trf.xlu0
    %v395 = vpop.trf.xlu0
    %v396 = vpop.trf.xlu0
    %v397 = vpop.trf.xlu0
    %v398 = vpop.trf.xlu0
    %v400 = vsel %vm155, %v383, 0
    %v403 = vsel %vm155, %v384, 0
    %v406 = vsel %vm155, %v385, 0
    %v409 = vsel %vm155, %v386, 0
    %411 = vmatprep.subr.mxu0 0.0
    %412 = vmatpush1.msra.mxu0 %v366
    %413 = vmatprep.subr.mxu0 0.0
    %414 = vmatpush1.msra.mxu0 0.0
    %415 = vmatprep.subr.mxu0 0.0
    %416 = vmatpush1.msra.mxu0 0.0
    %417 = vmatprep.subr.mxu0 0.0
    %418 = vmatpush1.msra.mxu0 0.0
    %419 = vmatprep.subr.mxu0 0.0
    %420 = vmatpush1.msra.mxu0 0.0
    %421 = vmatprep.subr.mxu0 0.0
    %422 = vmatpush1.msra.mxu0 0.0
    %423 = vmatprep.subr.mxu0 0.0
    %424 = vmatpush1.msra.mxu0 0.0
    %425 = vmatprep.subr.mxu0 0.0
    %426 = vmatpush1.msra.mxu0 0.0
    %427 = vmatprep.subr.mxu0 0.0
    %428 = vmatpush1.msra.mxu0 0.0
    %429 = vmatprep.subr.mxu0 0.0
    %430 = vmatpush1.msra.mxu0 0.0
    %431 = vmatprep.subr.mxu0 0.0
    %432 = vmatpush1.msra.mxu0 0.0
    %433 = vmatprep.subr.mxu0 0.0
    %434 = vmatpush1.msra.mxu0 0.0
    %435 = vmatprep.subr.mxu0 0.0
    %436 = vmatpush1.msra.mxu0 0.0
    %437 = vmatprep.subr.mxu0 0.0
    %438 = vmatpush1.msra.mxu0 0.0
    %439 = vmatprep.subr.mxu0 0.0
    %440 = vmatpush1.msra.mxu0 0.0
    %441 = vmatprep.subr.mxu0 0.0
    %442 = vmatpush1.msra.mxu0 0.0
    %443 = vmatprep.subr.mxu0 0.0
    %444 = vmatpush1.msra.mxu0 0.0
    %445 = vmatprep.subr.mxu0 0.0
    %446 = vmatpush1.msra.mxu0 0.0
    %447 = vmatprep.subr.mxu0 0.0
    %448 = vmatpush1.msra.mxu0 0.0
    %449 = vmatprep.subr.mxu0 0.0
    %450 = vmatpush1.msra.mxu0 0.0
    %451 = vmatprep.subr.mxu0 0.0
    %452 = vmatpush1.msra.mxu0 0.0
    %453 = vmatprep.subr.mxu0 0.0
    %454 = vmatpush1.msra.mxu0 0.0
    %455 = vmatprep.subr.mxu0 0.0
    %456 = vmatpush1.msra.mxu0 0.0
    %457 = vmatprep.subr.mxu0 0.0
    %458 = vmatpush1.msra.mxu0 0.0
    %459 = vmatprep.subr.mxu0 0.0
    %460 = vmatpush1.msra.mxu0 0.0
    %461 = vmatprep.subr.mxu0 0.0
    %462 = vmatpush1.msra.mxu0 0.0
    %463 = vmatprep.subr.mxu0 0.0
    %464 = vmatpush1.msra.mxu0 0.0
    %465 = vmatprep.subr.mxu0 0.0
    %466 = vmatpush1.msra.mxu0 0.0
    %467 = vmatprep.subr.mxu0 0.0
    %468 = vmatpush1.msra.mxu0 0.0
    %469 = vmatprep.subr.mxu0 0.0
    %470 = vmatpush1.msra.mxu0 0.0
    %471 = vmatprep.subr.mxu0 0.0
    %472 = vmatpush1.msra.mxu0 0.0
    %473 = vmatprep.subr.mxu0 0.0
    %474 = vmatpush1.msra.mxu0 0.0
    %475 = vmatprep.mubr.f32.mxu0 0.0
    %476 = vmatmul.mubr.f32.gmra.mrb[0].mxu0 %v400
    %v477 = vpop.f32.mrb[0].mxu0
    %v478 = vadd.f32 0.0, %v477
    %v479 = vpop.f32.mrb[0].mxu0
    %480 = vmatprep.mubr.f32.mxu0 0.0
    %481 = vmatmul.mubr.f32.gmra.mrb[0].mxu0 %v403
    %v482 = vpop.f32.mrb[0].mxu0
    %v483 = vadd.f32 0.0, %v482
    %v484 = vpop.f32.mrb[0].mxu0
    %485 = vmatprep.mubr.f32.mxu0 0.0
    %486 = vmatmul.mubr.f32.gmra.mrb[0].mxu0 %v406
    %v487 = vpop.f32.mrb[0].mxu0
    %v488 = vadd.f32 0.0, %v487
    %v489 = vpop.f32.mrb[0].mxu0
    %490 = vmatprep.mubr.f32.mxu0 0.0
    %491 = vmatmul.mubr.f32.gmra.mrb[0].mxu0 %v409
    %v492 = vpop.f32.mrb[0].mxu0
    %v493 = vadd.f32 0.0, %v492
    %v494 = vpop.f32.mrb[0].mxu0
    %495 = vdwg.mxu0
    %v496 = vrot.slane %v366, 4
    %v497 = vadd.f32 %v366, %v496
    %v498 = vrot.slane %v497, 2
    %v499 = vadd.f32 %v497, %v498
    %v500 = vrot.slane %v499, 1
    %v501 = vadd.f32 %v499, %v500
    %v502 = vmul.f32 %v478, 0.1
    %v503 = vmul.f32 %v483, 0.1
    %v504 = vmul.f32 %v488, 0.1
    %v505 = vmul.f32 %v493, 0.1
    %v506 = vsub.f32 %v263, %v502
    %v507 = vsub.f32 %v264, %v503
    %v508 = vsub.f32 %v265, %v504
    %v509 = vsub.f32 %v266, %v505
    %v510 = vmul.f32 %v501, 0.1
    %v511 = vsub.f32 %v268, %v510
    %s512 = scalar_lea.vmem %s0, 16
    %v513 = vld [vmem:[%s512] sm:$0xff]
    %s514 = scalar_lea.vmem %s1, 16
    %v515 = vld [vmem:[%s514] sm:$0xff]
    %v517 = vlaneseq
    %v518 = vshrl.u32 %v517, 7
    %v519 = vsub.s32 0, %v518
    %v520 = vrot.slane %v511, %v519
    %v523 = vsel %vm34, %v513, 0
    %525 = vmatprep.subr.mxu0 0.0
    %526 = vmatpush1.msra.mxu0 %v506
    %527 = vmatprep.subr.mxu0 0.0
    %528 = vmatpush1.msra.mxu0 %v507
    %529 = vmatprep.subr.mxu0 0.0
    %530 = vmatpush1.msra.mxu0 %v508
    %531 = vmatprep.subr.mxu0 0.0
    %532 = vmatpush1.msra.mxu0 %v509
    %533 = vmatprep.subr.mxu0 0.0
    %534 = vmatpush1.msra.mxu0 0.0
    %535 = vmatprep.subr.mxu0 0.0
    %536 = vmatpush1.msra.mxu0 0.0
    %537 = vmatprep.subr.mxu0 0.0
    %538 = vmatpush1.msra.mxu0 0.0
    %539 = vmatprep.subr.mxu0 0.0
    %540 = vmatpush1.msra.mxu0 0.0
    %541 = vmatprep.subr.mxu0 0.0
    %542 = vmatpush1.msra.mxu0 0.0
    %543 = vmatprep.subr.mxu0 0.0
    %544 = vmatpush1.msra.mxu0 0.0
    %545 = vmatprep.subr.mxu0 0.0
    %546 = vmatpush1.msra.mxu0 0.0
    %547 = vmatprep.subr.mxu0 0.0
    %548 = vmatpush1.msra.mxu0 0.0
    %549 = vmatprep.subr.mxu0 0.0
    %550 = vmatpush1.msra.mxu0 0.0
    %551 = vmatprep.subr.mxu0 0.0
    %552 = vmatpush1.msra.mxu0 0.0
    %553 = vmatprep.subr.mxu0 0.0
    %554 = vmatpush1.msra.mxu0 0.0
    %555 = vmatprep.subr.mxu0 0.0
    %556 = vmatpush1.msra.mxu0 0.0
    %557 = vmatprep.subr.mxu0 0.0
    %558 = vmatpush1.msra.mxu0 0.0
    %559 = vmatprep.subr.mxu0 0.0
    %560 = vmatpush1.msra.mxu0 0.0
    %561 = vmatprep.subr.mxu0 0.0
    %562 = vmatpush1.msra.mxu0 0.0
    %563 = vmatprep.subr.mxu0 0.0
    %564 = vmatpush1.msra.mxu0 0.0
    %565 = vmatprep.subr.mxu0 0.0
    %566 = vmatpush1.msra.mxu0 0.0
    %567 = vmatprep.subr.mxu0 0.0
    %568 = vmatpush1.msra.mxu0 0.0
    %569 = vmatprep.subr.mxu0 0.0
    %570 = vmatpush1.msra.mxu0 0.0
    %571 = vmatprep.subr.mxu0 0.0
    %572 = vmatpush1.msra.mxu0 0.0
    %573 = vmatprep.subr.mxu0 0.0
    %574 = vmatpush1.msra.mxu0 0.0
    %575 = vmatprep.subr.mxu0 0.0
    %576 = vmatpush1.msra.mxu0 0.0
    %577 = vmatprep.subr.mxu0 0.0
    %578 = vmatpush1.msra.mxu0 0.0
    %579 = vmatprep.subr.mxu0 0.0
    %580 = vmatpush1.msra.mxu0 0.0
    %581 = vmatprep.subr.mxu0 0.0
    %582 = vmatpush1.msra.mxu0 0.0
    %583 = vmatprep.subr.mxu0 0.0
    %584 = vmatpush1.msra.mxu0 0.0
    %585 = vmatprep.subr.mxu0 0.0
    %586 = vmatpush1.msra.mxu0 0.0
    %587 = vmatprep.subr.mxu0 0.0
    %588 = vmatpush1.msra.mxu0 0.0
    %589 = vmatprep.mubr.f32.mxu0 0.0
    %590 = vmatmul.mubr.f32.gmra.mrb[0].mxu0 %v523
    %v591 = vpop.f32.mrb[0].mxu0
    %v592 = vadd.f32 %v520, %v591
    %v593 = vpop.f32.mrb[0].mxu0
    %594 = vdwg.mxu0
    %v595 = vsub.f32 %v592, %v515
    %v596 = vmul.f32 %v595, %v595
    %597 = vadd.xlane.f32.xlu0 %v596
    %v598 = vpop.xlane.xlu0 %597
    %v599 = vrot.slane %v598, 4
    %v600 = vadd.f32 %v598, %v599
    %v601 = vrot.slane %v600, 2
    %v602 = vadd.f32 %v600, %v601
    %v603 = vrot.slane %v602, 1
    %v604 = vadd.f32 %v602, %v603
    %s605 = vtos %v604
    %s606 = smul.f32 %s605, 0.0078125
    %s607 = scalar_lea.smem [#allocation2], 2
    %608 = sst [smem:[%s607]] %s606
    %v609 = vmul.f32 %v595, 0.015625
    %610 = vxpose.xlu0.b32.start [1/16] %v513, 128
    %611 = vxpose.xlu0.b32.cont [2/16] 0.0, 128
    %612 = vxpose.xlu0.b32.cont [3/16] 0.0, 128
    %613 = vxpose.xlu0.b32.cont [4/16] 0.0, 128
    %614 = vxpose.xlu0.b32.cont [5/16] 0.0, 128
    %615 = vxpose.xlu0.b32.cont [6/16] 0.0, 128
    %616 = vxpose.xlu0.b32.cont [7/16] 0.0, 128
    %617 = vxpose.xlu0.b32.cont [8/16] 0.0, 128
    %618 = vxpose.xlu0.b32.cont [9/16] 0.0, 128
    %619 = vxpose.xlu0.b32.cont [10/16] 0.0, 128
    %620 = vxpose.xlu0.b32.cont [11/16] 0.0, 128
    %621 = vxpose.xlu0.b32.cont [12/16] 0.0, 128
    %622 = vxpose.xlu0.b32.cont [13/16] 0.0, 128
    %623 = vxpose.xlu0.b32.cont [14/16] 0.0, 128
    %624 = vxpose.xlu0.b32.cont [15/16] 0.0, 128
    %625 = vxpose.xlu0.b32.end [16/16] 0.0, 128
    %v626 = vpop.trf.xlu0
    %v627 = vpop.trf.xlu0
    %v628 = vpop.trf.xlu0
    %v629 = vpop.trf.xlu0
    %v630 = vpop.trf.xlu0
    %v631 = vpop.trf.xlu0
    %v632 = vpop.trf.xlu0
    %v633 = vpop.trf.xlu0
    %v634 = vpop.trf.xlu0
    %v635 = vpop.trf.xlu0
    %v636 = vpop.trf.xlu0
    %v637 = vpop.trf.xlu0
    %v638 = vpop.trf.xlu0
    %v639 = vpop.trf.xlu0
    %v640 = vpop.trf.xlu0
    %v641 = vpop.trf.xlu0
    %v643 = vsel %vm155, %v626, 0
    %v646 = vsel %vm155, %v627, 0
    %v649 = vsel %vm155, %v628, 0
    %v652 = vsel %vm155, %v629, 0
    %654 = vmatprep.subr.mxu0 0.0
    %655 = vmatpush1.msra.mxu0 %v609
    %656 = vmatprep.subr.mxu0 0.0
    %657 = vmatpush1.msra.mxu0 0.0
    %658 = vmatprep.subr.mxu0 0.0
    %659 = vmatpush1.msra.mxu0 0.0
    %660 = vmatprep.subr.mxu0 0.0
    %661 = vmatpush1.msra.mxu0 0.0
    %662 = vmatprep.subr.mxu0 0.0
    %663 = vmatpush1.msra.mxu0 0.0
    %664 = vmatprep.subr.mxu0 0.0
    %665 = vmatpush1.msra.mxu0 0.0
    %666 = vmatprep.subr.mxu0 0.0
    %667 = vmatpush1.msra.mxu0 0.0
    %668 = vmatprep.subr.mxu0 0.0
    %669 = vmatpush1.msra.mxu0 0.0
    %670 = vmatprep.subr.mxu0 0.0
    %671 = vmatpush1.msra.mxu0 0.0
    %672 = vmatprep.subr.mxu0 0.0
    %673 = vmatpush1.msra.mxu0 0.0
    %674 = vmatprep.subr.mxu0 0.0
    %675 = vmatpush1.msra.mxu0 0.0
    %676 = vmatprep.subr.mxu0 0.0
    %677 = vmatpush1.msra.mxu0 0.0
    %678 = vmatprep.subr.mxu0 0.0
    %679 = vmatpush1.msra.mxu0 0.0
    %680 = vmatprep.subr.mxu0 0.0
    %681 = vmatpush1.msra.mxu0 0.0
    %682 = vmatprep.subr.mxu0 0.0
    %683 = vmatpush1.msra.mxu0 0.0
    %684 = vmatprep.subr.mxu0 0.0
    %685 = vmatpush1.msra.mxu0 0.0
    %686 = vmatprep.subr.mxu0 0.0
    %687 = vmatpush1.msra.mxu0 0.0
    %688 = vmatprep.subr.mxu0 0.0
    %689 = vmatpush1.msra.mxu0 0.0
    %690 = vmatprep.subr.mxu0 0.0
    %691 = vmatpush1.msra.mxu0 0.0
    %692 = vmatprep.subr.mxu0 0.0
    %693 = vmatpush1.msra.mxu0 0.0
    %694 = vmatprep.subr.mxu0 0.0
    %695 = vmatpush1.msra.mxu0 0.0
    %696 = vmatprep.subr.mxu0 0.0
    %697 = vmatpush1.msra.mxu0 0.0
    %698 = vmatprep.subr.mxu0 0.0
    %699 = vmatpush1.msra.mxu0 0.0
    %700 = vmatprep.subr.mxu0 0.0
    %701 = vmatpush1.msra.mxu0 0.0
    %702 = vmatprep.subr.mxu0 0.0
    %703 = vmatpush1.msra.mxu0 0.0
    %704 = vmatprep.subr.mxu0 0.0
    %705 = vmatpush1.msra.mxu0 0.0
    %706 = vmatprep.subr.mxu0 0.0
    %707 = vmatpush1.msra.mxu0 0.0
    %708 = vmatprep.subr.mxu0 0.0
    %709 = vmatpush1.msra.mxu0 0.0
    %710 = vmatprep.subr.mxu0 0.0
    %711 = vmatpush1.msra.mxu0 0.0
    %712 = vmatprep.subr.mxu0 0.0
    %713 = vmatpush1.msra.mxu0 0.0
    %714 = vmatprep.subr.mxu0 0.0
    %715 = vmatpush1.msra.mxu0 0.0
    %716 = vmatprep.subr.mxu0 0.0
    %717 = vmatpush1.msra.mxu0 0.0
    %718 = vmatprep.mubr.f32.mxu0 0.0
    %719 = vmatmul.mubr.f32.gmra.mrb[0].mxu0 %v643
    %v720 = vpop.f32.mrb[0].mxu0
    %v721 = vadd.f32 0.0, %v720
    %v722 = vpop.f32.mrb[0].mxu0
    %723 = vmatprep.mubr.f32.mxu0 0.0
    %724 = vmatmul.mubr.f32.gmra.mrb[0].mxu0 %v646
    %v725 = vpop.f32.mrb[0].mxu0
    %v726 = vadd.f32 0.0, %v725
    %v727 = vpop.f32.mrb[0].mxu0
    %728 = vmatprep.mubr.f32.mxu0 0.0
    %729 = vmatmul.mubr.f32.gmra.mrb[0].mxu0 %v649
    %v730 = vpop.f32.mrb[0].mxu0
    %v731 = vadd.f32 0.0, %v730
    %v732 = vpop.f32.mrb[0].mxu0
    %733 = vmatprep.mubr.f32.mxu0 0.0
    %734 = vmatmul.mubr.f32.gmra.mrb[0].mxu0 %v652
    %v735 = vpop.f32.mrb[0].mxu0
    %v736 = vadd.f32 0.0, %v735
    %v737 = vpop.f32.mrb[0].mxu0
    %738 = vdwg.mxu0
    %v739 = vrot.slane %v609, 4
    %v740 = vadd.f32 %v609, %v739
    %v741 = vrot.slane %v740, 2
    %v742 = vadd.f32 %v740, %v741
    %v743 = vrot.slane %v742, 1
    %v744 = vadd.f32 %v742, %v743
    %v745 = vmul.f32 %v721, 0.1
    %v746 = vmul.f32 %v726, 0.1
    %v747 = vmul.f32 %v731, 0.1
    %v748 = vmul.f32 %v736, 0.1
    %v749 = vsub.f32 %v506, %v745
    %v750 = vsub.f32 %v507, %v746
    %v751 = vsub.f32 %v508, %v747
    %v752 = vsub.f32 %v509, %v748
    %v753 = vmul.f32 %v744, 0.1
    %v754 = vsub.f32 %v511, %v753
    %s755 = scalar_lea.vmem %s0, 24
    %v756 = vld [vmem:[%s755] sm:$0xff]
    %s757 = scalar_lea.vmem %s1, 24
    %v758 = vld [vmem:[%s757] sm:$0xff]
    %v760 = vlaneseq
    %v761 = vshrl.u32 %v760, 7
    %v762 = vsub.s32 0, %v761
    %v763 = vrot.slane %v754, %v762
    %v766 = vsel %vm34, %v756, 0
    %768 = vmatprep.subr.mxu0 0.0
    %769 = vmatpush1.msra.mxu0 %v749
    %770 = vmatprep.subr.mxu0 0.0
    %771 = vmatpush1.msra.mxu0 %v750
    %772 = vmatprep.subr.mxu0 0.0
    %773 = vmatpush1.msra.mxu0 %v751
    %774 = vmatprep.subr.mxu0 0.0
    %775 = vmatpush1.msra.mxu0 %v752
    %776 = vmatprep.subr.mxu0 0.0
    %777 = vmatpush1.msra.mxu0 0.0
    %778 = vmatprep.subr.mxu0 0.0
    %779 = vmatpush1.msra.mxu0 0.0
    %780 = vmatprep.subr.mxu0 0.0
    %781 = vmatpush1.msra.mxu0 0.0
    %782 = vmatprep.subr.mxu0 0.0
    %783 = vmatpush1.msra.mxu0 0.0
    %784 = vmatprep.subr.mxu0 0.0
    %785 = vmatpush1.msra.mxu0 0.0
    %786 = vmatprep.subr.mxu0 0.0
    %787 = vmatpush1.msra.mxu0 0.0
    %788 = vmatprep.subr.mxu0 0.0
    %789 = vmatpush1.msra.mxu0 0.0
    %790 = vmatprep.subr.mxu0 0.0
    %791 = vmatpush1.msra.mxu0 0.0
    %792 = vmatprep.subr.mxu0 0.0
    %793 = vmatpush1.msra.mxu0 0.0
    %794 = vmatprep.subr.mxu0 0.0
    %795 = vmatpush1.msra.mxu0 0.0
    %796 = vmatprep.subr.mxu0 0.0
    %797 = vmatpush1.msra.mxu0 0.0
    %798 = vmatprep.subr.mxu0 0.0
    %799 = vmatpush1.msra.mxu0 0.0
    %800 = vmatprep.subr.mxu0 0.0
    %801 = vmatpush1.msra.mxu0 0.0
    %802 = vmatprep.subr.mxu0 0.0
    %803 = vmatpush1.msra.mxu0 0.0
    %804 = vmatprep.subr.mxu0 0.0
    %805 = vmatpush1.msra.mxu0 0.0
    %806 = vmatprep.subr.mxu0 0.0
    %807 = vmatpush1.msra.mxu0 0.0
    %808 = vmatprep.subr.mxu0 0.0
    %809 = vmatpush1.msra.mxu0 0.0
    %810 = vmatprep.subr.mxu0 0.0
    %811 = vmatpush1.msra.mxu0 0.0
    %812 = vmatprep.subr.mxu0 0.0
    %813 = vmatpush1.msra.mxu0 0.0
    %814 = vmatprep.subr.mxu0 0.0
    %815 = vmatpush1.msra.mxu0 0.0
    %816 = vmatprep.subr.mxu0 0.0
    %817 = vmatpush1.msra.mxu0 0.0
    %818 = vmatprep.subr.mxu0 0.0
    %819 = vmatpush1.msra.mxu0 0.0
    %820 = vmatprep.subr.mxu0 0.0
    %821 = vmatpush1.msra.mxu0 0.0
    %822 = vmatprep.subr.mxu0 0.0
    %823 = vmatpush1.msra.mxu0 0.0
    %824 = vmatprep.subr.mxu0 0.0
    %825 = vmatpush1.msra.mxu0 0.0
    %826 = vmatprep.subr.mxu0 0.0
    %827 = vmatpush1.msra.mxu0 0.0
    %828 = vmatprep.subr.mxu0 0.0
    %829 = vmatpush1.msra.mxu0 0.0
    %830 = vmatprep.subr.mxu0 0.0
    %831 = vmatpush1.msra.mxu0 0.0
    %832 = vmatprep.mubr.f32.mxu0 0.0
    %833 = vmatmul.mubr.f32.gmra.mrb[0].mxu0 %v766
    %v834 = vpop.f32.mrb[0].mxu0
    %v835 = vadd.f32 %v763, %v834
    %v836 = vpop.f32.mrb[0].mxu0
    %837 = vdwg.mxu0
    %v838 = vsub.f32 %v835, %v758
    %v839 = vmul.f32 %v838, %v838
    %840 = vadd.xlane.f32.xlu0 %v839
    %v841 = vpop.xlane.xlu0 %840
    %v842 = vrot.slane %v841, 4
    %v843 = vadd.f32 %v841, %v842
    %v844 = vrot.slane %v843, 2
    %v845 = vadd.f32 %v843, %v844
    %v846 = vrot.slane %v845, 1
    %v847 = vadd.f32 %v845, %v846
    %s848 = vtos %v847
    %s849 = smul.f32 %s848, 0.0078125
    %s850 = scalar_lea.smem [#allocation2], 3
    %851 = sst [smem:[%s850]] %s849
    %v852 = vmul.f32 %v838, 0.015625
    %853 = vxpose.xlu0.b32.start [1/16] %v756, 128
    %854 = vxpose.xlu0.b32.cont [2/16] 0.0, 128
    %855 = vxpose.xlu0.b32.cont [3/16] 0.0, 128
    %856 = vxpose.xlu0.b32.cont [4/16] 0.0, 128
    %857 = vxpose.xlu0.b32.cont [5/16] 0.0, 128
    %858 = vxpose.xlu0.b32.cont [6/16] 0.0, 128
    %859 = vxpose.xlu0.b32.cont [7/16] 0.0, 128
    %860 = vxpose.xlu0.b32.cont [8/16] 0.0, 128
    %861 = vxpose.xlu0.b32.cont [9/16] 0.0, 128
    %862 = vxpose.xlu0.b32.cont [10/16] 0.0, 128
    %863 = vxpose.xlu0.b32.cont [11/16] 0.0, 128
    %864 = vxpose.xlu0.b32.cont [12/16] 0.0, 128
    %865 = vxpose.xlu0.b32.cont [13/16] 0.0, 128
    %866 = vxpose.xlu0.b32.cont [14/16] 0.0, 128
    %867 = vxpose.xlu0.b32.cont [15/16] 0.0, 128
    %868 = vxpose.xlu0.b32.end [16/16] 0.0, 128
    %v869 = vpop.trf.xlu0
    %v870 = vpop.trf.xlu0
    %v871 = vpop.trf.xlu0
    %v872 = vpop.trf.xlu0
    %v873 = vpop.trf.xlu0
    %v874 = vpop.trf.xlu0
    %v875 = vpop.trf.xlu0
    %v876 = vpop.trf.xlu0
    %v877 = vpop.trf.xlu0
    %v878 = vpop.trf.xlu0
    %v879 = vpop.trf.xlu0
    %v880 = vpop.trf.xlu0
    %v881 = vpop.trf.xlu0
    %v882 = vpop.trf.xlu0
    %v883 = vpop.trf.xlu0
    %v884 = vpop.trf.xlu0
    %v886 = vsel %vm155, %v869, 0
    %v889 = vsel %vm155, %v870, 0
    %v892 = vsel %vm155, %v871, 0
    %v895 = vsel %vm155, %v872, 0
    %897 = vmatprep.subr.mxu0 0.0
    %898 = vmatpush1.msra.mxu0 %v852
    %899 = vmatprep.subr.mxu0 0.0
    %900 = vmatpush1.msra.mxu0 0.0
    %901 = vmatprep.subr.mxu0 0.0
    %902 = vmatpush1.msra.mxu0 0.0
    %903 = vmatprep.subr.mxu0 0.0
    %904 = vmatpush1.msra.mxu0 0.0
    %905 = vmatprep.subr.mxu0 0.0
    %906 = vmatpush1.msra.mxu0 0.0
    %907 = vmatprep.subr.mxu0 0.0
    %908 = vmatpush1.msra.mxu0 0.0
    %909 = vmatprep.subr.mxu0 0.0
    %910 = vmatpush1.msra.mxu0 0.0
    %911 = vmatprep.subr.mxu0 0.0
    %912 = vmatpush1.msra.mxu0 0.0
    %913 = vmatprep.subr.mxu0 0.0
    %914 = vmatpush1.msra.mxu0 0.0
    %915 = vmatprep.subr.mxu0 0.0
    %916 = vmatpush1.msra.mxu0 0.0
    %917 = vmatprep.subr.mxu0 0.0
    %918 = vmatpush1.msra.mxu0 0.0
    %919 = vmatprep.subr.mxu0 0.0
    %920 = vmatpush1.msra.mxu0 0.0
    %921 = vmatprep.subr.mxu0 0.0
    %922 = vmatpush1.msra.mxu0 0.0
    %923 = vmatprep.subr.mxu0 0.0
    %924 = vmatpush1.msra.mxu0 0.0
    %925 = vmatprep.subr.mxu0 0.0
    %926 = vmatpush1.msra.mxu0 0.0
    %927 = vmatprep.subr.mxu0 0.0
    %928 = vmatpush1.msra.mxu0 0.0
    %929 = vmatprep.subr.mxu0 0.0
    %930 = vmatpush1.msra.mxu0 0.0
    %931 = vmatprep.subr.mxu0 0.0
    %932 = vmatpush1.msra.mxu0 0.0
    %933 = vmatprep.subr.mxu0 0.0
    %934 = vmatpush1.msra.mxu0 0.0
    %935 = vmatprep.subr.mxu0 0.0
    %936 = vmatpush1.msra.mxu0 0.0
    %937 = vmatprep.subr.mxu0 0.0
    %938 = vmatpush1.msra.mxu0 0.0
    %939 = vmatprep.subr.mxu0 0.0
    %940 = vmatpush1.msra.mxu0 0.0
    %941 = vmatprep.subr.mxu0 0.0
    %942 = vmatpush1.msra.mxu0 0.0
    %943 = vmatprep.subr.mxu0 0.0
    %944 = vmatpush1.msra.mxu0 0.0
    %945 = vmatprep.subr.mxu0 0.0
    %946 = vmatpush1.msra.mxu0 0.0
    %947 = vmatprep.subr.mxu0 0.0
    %948 = vmatpush1.msra.mxu0 0.0
    %949 = vmatprep.subr.mxu0 0.0
    %950 = vmatpush1.msra.mxu0 0.0
    %951 = vmatprep.subr.mxu0 0.0
    %952 = vmatpush1.msra.mxu0 0.0
    %953 = vmatprep.subr.mxu0 0.0
    %954 = vmatpush1.msra.mxu0 0.0
    %955 = vmatprep.subr.mxu0 0.0
    %956 = vmatpush1.msra.mxu0 0.0
    %957 = vmatprep.subr.mxu0 0.0
    %958 = vmatpush1.msra.mxu0 0.0
    %959 = vmatprep.subr.mxu0 0.0
    %960 = vmatpush1.msra.mxu0 0.0
    %961 = vmatprep.mubr.f32.mxu0 0.0
    %962 = vmatmul.mubr.f32.gmra.mrb[0].mxu0 %v886
    %v963 = vpop.f32.mrb[0].mxu0
    %v964 = vadd.f32 0.0, %v963
    %v965 = vpop.f32.mrb[0].mxu0
    %966 = vmatprep.mubr.f32.mxu0 0.0
    %967 = vmatmul.mubr.f32.gmra.mrb[0].mxu0 %v889
    %v968 = vpop.f32.mrb[0].mxu0
    %v969 = vadd.f32 0.0, %v968
    %v970 = vpop.f32.mrb[0].mxu0
    %971 = vmatprep.mubr.f32.mxu0 0.0
    %972 = vmatmul.mubr.f32.gmra.mrb[0].mxu0 %v892
    %v973 = vpop.f32.mrb[0].mxu0
    %v974 = vadd.f32 0.0, %v973
    %v975 = vpop.f32.mrb[0].mxu0
    %976 = vmatprep.mubr.f32.mxu0 0.0
    %977 = vmatmul.mubr.f32.gmra.mrb[0].mxu0 %v895
    %v978 = vpop.f32.mrb[0].mxu0
    %v979 = vadd.f32 0.0, %v978
    %v980 = vpop.f32.mrb[0].mxu0
    %981 = vdwg.mxu0
    %v982 = vrot.slane %v852, 4
    %v983 = vadd.f32 %v852, %v982
    %v984 = vrot.slane %v983, 2
    %v985 = vadd.f32 %v983, %v984
    %v986 = vrot.slane %v985, 1
    %v987 = vadd.f32 %v985, %v986
    %v988 = vmul.f32 %v964, 0.1
    %v989 = vmul.f32 %v969, 0.1
    %v990 = vmul.f32 %v974, 0.1
    %v991 = vmul.f32 %v979, 0.1
    %v992 = vsub.f32 %v749, %v988
    %v993 = vsub.f32 %v750, %v989
    %v994 = vsub.f32 %v751, %v990
    %v995 = vsub.f32 %v752, %v991
    %v996 = vmul.f32 %v987, 0.1
    %v997 = vsub.f32 %v754, %v996
    %998 = vst [vmem:[%s5] sm:$0xff] %v992
    %999 = vst [vmem:[%s5 + $0x8] sm:$0xff] %v993
    %1000 = vst [vmem:[%s5 + $0x10] sm:$0xff] %v994
    %1001 = vst [vmem:[%s5 + $0x18] sm:$0xff] %v995
    %1002 = vst [vmem:[%s6] sm:$0x1] %v997
    // Predicated region
    $region18: #{fused_train_steps.1} parent=1 // pred_check
      _
    $region19: #{fused_train_steps.1} parent=1 // pred_check_branch
      %1004 = sbr.rel (0) target = $region21
    $region20: #{fused_train_steps.1} parent=1 // pred_region
      %s1006 = ssub.s32 16, 16
      %1007 = vsyncadd [#allocation3], %s1006
      %1010 = dma.smem_to_hbm [#allocation2], 16, %s4, [#allocation3]
    $region21: #{fused_train_steps.1} parent=1 // pred_fallthru
      _
    // Predicated region
    $region22: #{fused_train_steps.1} parent=1 // pred_check
      _
    $region23: #{fused_train_steps.1} parent=1 // pred_check_branch
      %1012 = sbr.rel (0) target = $region25
    $region24: #{fused_train_steps.1} parent=1 // pred_region
      _
    $region25: #{fused_train_steps.1} parent=1 // pred_fallthru
      _
    // Predicated region
    $region26: #{fused_train_steps.1} parent=1 // pred_check
      _
    $region27: #{fused_train_steps.1} parent=1 // pred_check_branch
      %1014 = sbr.rel (0) target = $region29
    $region28: #{fused_train_steps.1} parent=1 // pred_region
      _
    $region29: #{fused_train_steps.1} parent=1 // pred_fallthru
      _
    // Predicated region
    $region30: #{fused_train_steps.1} parent=1 // pred_check
      _
    $region31: #{fused_train_steps.1} parent=1 // pred_check_branch
      %1016 = sbr.rel (0) target = $region33
    $region32: #{fused_train_steps.1} parent=1 // pred_region
      %1017 = dma.done [#allocation3], 16
    $region33: #{fused_train_steps.1} parent=1 // pred_fallthru
      _
    // Predicated region
    $region34: #{fused_train_steps.1} parent=1 // pred_check
      _
    $region35: #{fused_train_steps.1} parent=1 // pred_check_branch
      %1019 = sbr.rel (0) target = $region37
    $region36: #{fused_train_steps.1} parent=1 // pred_region
      _
    $region37: #{fused_train_steps.1} parent=1 // pred_fallthru
      _
    // Predicated region
    $region38: #{fused_train_steps.1} parent=1 // pred_check
      _
    $region39: #{fused_train_steps.1} parent=1 // pred_check_branch
      %1021 = sbr.rel (0) target = $region41
    $region40: #{fused_train_steps.1} parent=1 // pred_region
      _
    $region41: #{fused_train_steps.1} parent=1 // pred_fallthru
      _
    %1022 = sfence
    %1023 = vsyncpa [#allocation3], 1

</llo_original>
